<compile_context>
chip_gen: v7x
topology: tpu7x:2x2x1
jax: 0.10.0
libtpu: 0.0.40
codegen_flags: <defaults>
</compile_context>

<pallas_src>
import jax
import jax.numpy as jnp
import numpy as np
from jax.experimental import pallas as pl
from jax.experimental.pallas import tpu as pltpu


def _pair(v):
    return tuple(v) if isinstance(v, (tuple, list)) else (int(v), int(v))


def _round_up(x, m):
    return ((x + m - 1) // m) * m


def _conv_t_matmul_kernel(p_ref, w_ref, add_ref, o_ref):
    # p_ref:   (Kp, TN)      im2col patches^T for one batch element (MXU dtype)
    # w_ref:   (Cout_s, Kp)  packed correlation weights (MXU dtype), resident
    # add_ref: (Cout_s, TN)  f32 bias + scalar-t contribution (batch-invariant)
    # o_ref:   (Cout_s, TN)  output tile (channel-major: Cout on sublanes, N on lanes)
    acc = jnp.dot(w_ref[...], p_ref[...], preferred_element_type=jnp.float32)
    o_ref[...] = (acc + add_ref[...]).astype(o_ref.dtype)


def _choose_tile_n(N, per_col_bytes, budget_bytes=8 << 20):
    """Largest N-tile that divides N, is a lane multiple (or N itself), and keeps the
    per-grid-step VMEM footprint under `budget_bytes` (well inside the scoped-VMEM
    defaults of v5e/v6e/v7x)."""
    if N * per_col_bytes <= budget_bytes or N % 128 != 0:
        return N
    candidates = [c for c in range(128, N, 128) if N % c == 0]
    for c in reversed(candidates):
        if c * per_col_bytes <= budget_bytes:
            return c
    return candidates[0] if candidates else N


def concat_conv_transpose2d(t, y, weight, bias=None, *, stride=1, padding=0,
                            output_padding=0, dilation=1, groups=1,
                            mxu_dtype=jnp.bfloat16):
    """t: scalar; y: (B, Cin, H, W); weight: (Cin+1, Cout, kH, kW) [PyTorch
    ConvTranspose2d layout]; bias: (Cout,) or None.  Returns (B, Cout, H_out, W_out)."""
    if groups != 1:
        # TODO(synk): grouped transposed convolution not implemented.
        raise NotImplementedError("groups != 1 is not supported")

    B, Cin, H, W = y.shape
    Cin1, Cout, kH, kW = weight.shape
    assert Cin1 == Cin + 1, "weight must have in_channels = Cin + 1 (t channel)"

    s_h, s_w = _pair(stride)
    p_h, p_w = _pair(padding)
    op_h, op_w = _pair(output_padding)
    d_h, d_w = _pair(dilation)

    lo_h = d_h * (kH - 1) - p_h
    hi_h = lo_h + op_h
    lo_w = d_w * (kW - 1) - p_w
    hi_w = lo_w + op_w

    H_out = (H - 1) * s_h - 2 * p_h + d_h * (kH - 1) + op_h + 1
    W_out = (W - 1) * s_w - 2 * p_w + d_w * (kW - 1) + op_w + 1
    N = H_out * W_out
    K = kH * kW * Cin
    Kp = _round_up(K, 8)
    Cout_s = _round_up(Cout, 8)
    out_dtype = y.dtype

    # ---- activations: dilate + pad once (one lax.pad), then im2col to (K, N) ----------
    y_nhwc = jnp.transpose(y, (0, 2, 3, 1))                                   # (B,H,W,Cin)
    zero = jnp.zeros((), y_nhwc.dtype)
    ypad = jax.lax.pad(
        y_nhwc, zero,
        [(0, 0, 0), (lo_h, hi_h, s_h - 1), (lo_w, hi_w, s_w - 1), (0, 0, 0)])
    wins = [ypad[:, kh * d_h:kh * d_h + H_out, kw * d_w:kw * d_w + W_out, :]
            for kh in range(kH) for kw in range(kW)]
    patches = jnp.stack(wins, axis=1)                             # (B, kH*kW, H_out, W_out, Cin)
    patches = jnp.transpose(patches, (0, 1, 4, 2, 3)).reshape(B, K, N)        # (B, K, N)
    patches = jnp.pad(patches, ((0, 0), (0, Kp - K), (0, 0))).astype(mxu_dtype)

    # ---- weights: flip to correlation form, pack ONCE into a (Cout_s, Kp) matrix ------
    wflip = jnp.flip(weight, axis=(2, 3)).astype(jnp.float32)                 # (Cin+1,Cout,kH,kW)
    wmat = jnp.transpose(wflip[1:], (1, 2, 3, 0)).reshape(Cout, K)            # (Cout, K)
    wmat = jnp.pad(wmat, ((0, Cout_s - Cout), (0, Kp - K))).astype(mxu_dtype)

    # ---- scalar-t channel + bias: batch-invariant additive slab (Cout_s, N), f32 ------
    tmask = jax.lax.pad(jnp.ones((H, W), jnp.float32), jnp.float32(0),
                        [(lo_h, hi_h, s_h - 1), (lo_w, hi_w, s_w - 1)])       # (Hp, Wp)
    t_wins = jnp.stack([tmask[kh * d_h:kh * d_h + H_out, kw * d_w:kw * d_w + W_out]
                        for kh in range(kH) for kw in range(kW)], axis=0)     # (kH*kW,H_out,W_out)
    t_mat = t_wins.reshape(kH * kW, N)
    w_t = wflip[0].reshape(Cout, kH * kW)                                     # t-channel weights
    add_slab = jnp.asarray(t, jnp.float32) * (w_t @ t_mat)                    # (Cout, N)
    if bias is not None:
        add_slab = add_slab + bias.astype(jnp.float32)[:, None]
    add_slab = jnp.pad(add_slab, ((0, Cout_s - Cout), (0, 0)))                # (Cout_s, N)

    # ---- Pallas call: one MXU matmul + one f32 add per (batch, N-tile) grid step ------
    mxu_item = jnp.dtype(mxu_dtype).itemsize
    out_item = jnp.dtype(out_dtype).itemsize
    per_col = 2 * Kp * mxu_item + 2 * Cout_s * out_item + 2 * Cout_s * 4
    TN = _choose_tile_n(N, per_col)

    flops = 2 * B * N * K * Cout                       # real K / Cout, no t rank-1 term
    bytes_accessed = int(patches.size * mxu_item + wmat.size * mxu_item
                         + add_slab.size * 4 + B * Cout_s * N * out_item)

    out3 = pl.pallas_call(
        _conv_t_matmul_kernel,
        out_shape=jax.ShapeDtypeStruct((B, Cout_s, N), out_dtype),
        grid=(B, N // TN),
        in_specs=[
            pl.BlockSpec((None, Kp, TN), lambda b, n: (b, 0, n)),   # patches (per batch)
            pl.BlockSpec((Cout_s, Kp), lambda b, n: (0, 0)),        # weights (resident)
            pl.BlockSpec((Cout_s, TN), lambda b, n: (0, n)),        # bias + t slab
        ],
        out_specs=pl.BlockSpec((None, Cout_s, TN), lambda b, n: (b, 0, n)),
        compiler_params=pltpu.CompilerParams(
            dimension_semantics=("parallel", "parallel")),
        cost_estimate=pl.CostEstimate(flops=flops, transcendentals=0,
                                      bytes_accessed=bytes_accessed),
    )(patches, wmat, add_slab)

    # Channel-major result maps straight to NCHW: drop (tiny) sublane pad, split N.
    return out3[:, :Cout, :].reshape(B, Cout, H_out, W_out)


def concat_conv_transpose2d_ref(t, y, weight, bias, stride, padding, output_padding, dilation):
    """Direct scatter-style numpy reference mirroring F.conv_transpose2d on channel_cat(t, y)."""
    y = np.asarray(y, dtype=np.float64)
    weight = np.asarray(weight, dtype=np.float64)
    B, Cin, H, W = y.shape
    Cin1, Cout, kH, kW = weight.shape
    s_h, s_w = _pair(stride)
    p_h, p_w = _pair(padding)
    op_h, op_w = _pair(output_padding)
    d_h, d_w = _pair(dilation)
    H_out = (H - 1) * s_h - 2 * p_h + d_h * (kH - 1) + op_h + 1
    W_out = (W - 1) * s_w - 2 * p_w + d_w * (kW - 1) + op_w + 1

    ty = np.concatenate([np.full((B, 1, H, W), float(t), dtype=np.float64), y], axis=1)
    out = np.zeros((B, Cout, H_out, W_out), dtype=np.float64)
    for kh in range(kH):
        for kw in range(kW):
            for ih in range(H):
                oh = ih * s_h - p_h + kh * d_h
                if not (0 <= oh < H_out):
                    continue
                for iw in range(W):
                    ow = iw * s_w - p_w + kw * d_w
                    if not (0 <= ow < W_out):
                        continue
                    out[:, :, oh, ow] += ty[:, :, ih, iw] @ weight[:, :, kh, kw]
    if bias is not None:
        out += np.asarray(bias, dtype=np.float64).reshape(1, Cout, 1, 1)
    return out


if __name__ == "__main__":
    key = jax.random.PRNGKey(0)
    k_y, k_w, k_b = jax.random.split(key, 3)

    B, Cin, H, W = 2, 4, 16, 16
    Cout, ksize = 8, 3
    stride, padding, output_padding, dilation = 2, 1, 1, 1   # 16x16 -> 32x32 upsample

    # PyTorch ConvTranspose2d weight layout: (in_channels, out_channels, kH, kW),
    # with in_channels = Cin + 1 because of the prepended t channel.
    weight = jax.random.normal(k_w, (Cin + 1, Cout, ksize, ksize), jnp.float32) * 0.1
    bias = jax.random.normal(k_b, (Cout,), jnp.float32) * 0.1
    y = jax.random.normal(k_y, (B, Cin, H, W), jnp.float32)
    t = jnp.float32(0.37)

    ref = concat_conv_transpose2d_ref(t, y, weight, bias, stride, padding,
                                      output_padding, dilation)

    # f32 MXU-operand path: tight numerical check.
    out_f32 = concat_conv_transpose2d(t, y, weight, bias, stride=stride, padding=padding,
                                      output_padding=output_padding, dilation=dilation,
                                      mxu_dtype=jnp.float32)
    out_f32 = jax.block_until_ready(out_f32)
    assert out_f32.shape == (B, Cout, 32, 32), out_f32.shape
    np.testing.assert_allclose(np.asarray(out_f32, dtype=np.float64), ref,
                               rtol=2e-3, atol=2e-3)

    # Default bf16 MXU-operand path (f32 accumulation + f32 epilogue): looser check.
    out_bf = concat_conv_transpose2d(t, y, weight, bias, stride=stride, padding=padding,
                                     output_padding=output_padding, dilation=dilation)
    out_bf = jax.block_until_ready(out_bf)
    assert out_bf.shape == (B, Cout, 32, 32), out_bf.shape
    np.testing.assert_allclose(np.asarray(out_bf, dtype=np.float64), ref,
                               rtol=2e-2, atol=2e-2)

    print("KERNEL_OK")
</pallas_src>

<mosaic_0001>
module attributes {stable_mosaic.version = 11 : i64} {
  func.func @_conv_t_matmul_kernel(%arg0: i32, %arg1: i32, %arg2: memref<1x40x1024xf32, #tpu.memory_space<vmem>>, %arg3: memref<8x40xf32, #tpu.memory_space<vmem>>, %arg4: memref<8x1024xf32, #tpu.memory_space<vmem>>, %arg5: memref<1x8x1024xf32, #tpu.memory_space<vmem>>) attributes {dimension_semantics = [#tpu.dimension_semantics<parallel>, #tpu.dimension_semantics<parallel>], iteration_bounds = array<i64: 2, 1>, scalar_prefetch = 0 : i64, scratch_operands = 0 : i64, tpu.core_type = #tpu.core_type<tc>, window_params = [{transform_indices = @transform_0, window_bounds = array<i64: 1, 40, 1024>}, {pipeline_mode = #tpu.pipeline_mode<synchronous>, transform_indices = @transform_1, window_bounds = array<i64: 8, 40>}, {transform_indices = @transform_2, window_bounds = array<i64: 8, 1024>}, {transform_indices = @transform_3, window_bounds = array<i64: 1, 8, 1024>}]} {
    %c0 = arith.constant 0 : index
    %c0_0 = arith.constant 0 : index
    %0 = vector.load %arg3[%c0, %c0_0] : memref<8x40xf32, #tpu.memory_space<vmem>>, vector<8x40xf32>
    %c0_1 = arith.constant 0 : index
    %c0_2 = arith.constant 0 : index
    %c0_3 = arith.constant 0 : index
    %1 = vector.load %arg2[%c0_1, %c0_2, %c0_3] : memref<1x40x1024xf32, #tpu.memory_space<vmem>>, vector<1x40x1024xf32>
    %2 = vector.shape_cast %1 : vector<1x40x1024xf32> to vector<40x1024xf32>
    %cst = arith.constant dense<0.000000e+00> : vector<8x1024xf32>
    %3 = tpu.matmul %0, %2, %cst {dimension_numbers = #tpu.dot_dimension_numbers<[1], [0], [0], [1], [0, 0, 1, 1], [], []>} : vector<8x40xf32>, vector<40x1024xf32>, vector<8x1024xf32> -> vector<8x1024xf32>
    %c0_4 = arith.constant 0 : index
    %c0_5 = arith.constant 0 : index
    %4 = vector.load %arg4[%c0_4, %c0_5] : memref<8x1024xf32, #tpu.memory_space<vmem>>, vector<8x1024xf32>
    %5 = arith.addf %3, %4 : vector<8x1024xf32>
    %c0_6 = arith.constant 0 : index
    %c0_7 = arith.constant 0 : index
    %c0_8 = arith.constant 0 : index
    %6 = vector.load %arg5[%c0_6, %c0_7, %c0_8] : memref<1x8x1024xf32, #tpu.memory_space<vmem>>, vector<1x8x1024xf32>
    %7 = vector.shape_cast %6 : vector<1x8x1024xf32> to vector<8x1024xf32>
    %8 = vector.shape_cast %5 : vector<8x1024xf32> to vector<1x8x1024xf32>
    tpu.vector_store %arg5[%c0_6, %c0_7, %c0_8], %8 {strides = array<i32>} : memref<1x8x1024xf32, #tpu.memory_space<vmem>>, vector<1x8x1024xf32>,
    return
  }
  func.func @transform_0(%arg0: i32, %arg1: i32) -> (i32, i32, i32) {
    %c0_i32 = arith.constant 0 : i32
    %c0_i32_0 = arith.constant 0 : i32
    return %arg0, %c0_i32, %arg1 : i32, i32, i32
  }
  func.func @transform_1(%arg0: i32, %arg1: i32) -> (i32, i32) {
    %c0_i32 = arith.constant 0 : i32
    %c0_i32_0 = arith.constant 0 : i32
    %c0_i32_1 = arith.constant 0 : i32
    return %c0_i32, %c0_i32_0 : i32, i32
  }
  func.func @transform_2(%arg0: i32, %arg1: i32) -> (i32, i32) {
    %c0_i32 = arith.constant 0 : i32
    %c0_i32_0 = arith.constant 0 : i32
    return %c0_i32, %arg1 : i32, i32
  }
  func.func @transform_3(%arg0: i32, %arg1: i32) -> (i32, i32, i32) {
    %c0_i32 = arith.constant 0 : i32
    %c0_i32_0 = arith.constant 0 : i32
    return %arg0, %c0_i32, %arg1 : i32, i32, i32
  }
}

</mosaic_0001>

<llo_original>
// kernel: tpu_custom_call.1
$region0: #{tpu_custom_call.1}
  #allocation0 [shape = 'u32[]', space=smem, size = 0x4, offset = 0x4, fixed_abs, tag = 'smem constant byte address 0x4 - core index']
  #allocation1 [shape = 'u32[144,128]{1,0:T(1,128)}', space=vmem, size = 0x12000, scoped, tag = 'internal scratch']
  %s0 = inlined_call_operand.hbm [shape: f32[2,40,1024], index: 0, kind: input, shape index: {}]
  %s1 = inlined_call_operand.hbm [shape: f32[8,40], index: 1, kind: input, shape index: {}]
  %s2 = inlined_call_operand.hbm [shape: f32[8,1024], index: 2, kind: input, shape index: {}]
  %s3 = inlined_call_operand.hbm [shape: f32[2,8,1024], index: 3, kind: output, shape index: {}]
  %s4 = sld [smem:[#allocation0]]
  $region57: #{tpu_custom_call.1} parent=0
    _
  %s6 = ssub.s32 1, %s4
  %s7 = scalar_select 0, %s6, %s4
  $region1: #{tpu_custom_call.1} parent=0
    #allocation2 [shape = 'u8[327680]{0}', space=vmem, size = 0x50000, scoped, tag = 'input window, operand 0']
    #allocation3 [shape = 's32[2]{0}', space=sflag, size = 0x8, scoped, tag = 'scoped memory for tpu_custom_call.1']
    #allocation4 [shape = 's32[2]{0}', space=sflag, size = 0x8, scoped, tag = 'scoped memory for tpu_custom_call.1']
    #allocation5 [shape = 'u8[4096]{0}', space=vmem, size = 0x1000, scoped, tag = 'input window, operand 1, single buffered']
    #allocation6 [shape = 's32[1]{0}', space=sflag, size = 0x4, scoped, tag = 'scoped memory for tpu_custom_call.1']
    #allocation7 [shape = 'u8[32768]{0}', space=vmem, size = 0x8000, scoped, tag = 'input window, operand 2, single buffered']
    #allocation8 [shape = 'u8[65536]{0}', space=vmem, size = 0x10000, scoped, tag = 'output window, operand 0']
    %8 = vsyncpa [#allocation3], 0
    %s9 = scalar_lea.sflag [#allocation3], 1
    %10 = vsyncpa %s9, 0
    %11 = vsyncpa [#allocation6], 0
    %12 = vsyncpa [#allocation4], 0
    %s13 = scalar_lea.sflag [#allocation4], 1
    %14 = vsyncpa %s13, 0
    loop: start=0, step=1, limit=4
    $region2: #{tpu_custom_call.1} parent=1 // loop_pre_header
      _
    $region3: #{tpu_custom_call.1} parent=1 // loop_header
      %s16 = sphi 0, %s20
      %p17 = scmp.ge.s32.totalorder %s16, 4
      %s23 = sphi 0, %s35
      %s24 = sphi 0, %s31
      %s25 = sphi 0, %s23
      %s26 = sphi 0, %s24
      %s27 = sphi 0, %s25
      %s28 = sphi 0, %s26
      %s40 = sphi 0, %s42
      %s43 = sphi 0, %s40
      %s44 = sphi 0, %s43
      %s60 = sphi 0, %s44
      %s64 = sphi 0, %s64
      %s66 = sphi 0, %s64
      %s67 = sphi 0, %s66
      %s81 = sphi 0, %s67
      %s87 = sphi 0, %s89
      %s90 = sphi 0, %s87
      %s91 = sphi 0, %s90
      %s107 = sphi 0, %s91
      %s115 = sphi 0, %s117
      %s118 = sphi 0, %s115
      %s119 = sphi 0, %s118
      %s135 = sphi 0, %s119
    $region4: #{tpu_custom_call.1} parent=1 // loop_header_branch
      %19 = sbr.rel (%p17) target = $region8
    $region5: #{tpu_custom_call.1} parent=1 // loop_body
      %s21 = ssub.s32 %s16, 1
      %s22 = ssub.s32 %s16, 2
      %s29 = sadd.s32 1, %s24
      %p30 = scmp.ge.s32.totalorder %s29, 1
      %s31 = scalar_select %p30, 0, %s29
      %s32 = sadd.s32 1, %s23
      %s33 = scalar_select %p30, %s32, %s23
      %p34 = scmp.ge.s32.totalorder %s33, 2
      %s35 = scalar_select %p34, 0, %s33
      %s36 = ssub.s32 %s23, %s35
      %s37 = ssub.s32 %s24, %s31
      %s38 = sor.u32 %s36, %s37
      %p39 = scmp.eq.s32.totalorder %s38, 0
      %s41 = sadd.s32 %s40, 1
      %s42 = scalar_select %p39, %s40, %s41
      %p45 = pneg %p39
      %p46 = scmp.eq.s32.totalorder %s16, 1
      %p47 = por %p45, %p46
      %p48 = scmp.ne.s32.totalorder %s40, %s43
      %p49 = scmp.eq.s32.totalorder %s16, 0
      %p50 = por %p48, %p49
      %p51 = scmp.ne.s32.totalorder %s40, %s43
      %p52 = scmp.eq.s32.totalorder %s21, 1
      %p53 = por %p51, %p52
      %p54 = scmp.ne.s32.totalorder %s43, %s44
      %p55 = scmp.eq.s32.totalorder %s21, 0
      %p56 = por %p54, %p55
      %p57 = scmp.ne.s32.totalorder %s43, %s44
      %p58 = scmp.eq.s32.totalorder %s22, 1
      %p59 = por %p57, %p58
      %p61 = scmp.ne.s32.totalorder %s44, %s60
      %p62 = scmp.eq.s32.totalorder %s22, 0
      %p63 = por %p61, %p62
      %s65 = sadd.s32 %s64, 1
      %p68 = scmp.eq.s32.totalorder %s16, 1
      %p69 = scmp.ne.s32.totalorder %s64, %s66
      %p70 = scmp.eq.s32.totalorder %s16, 0
      %p71 = por %p69, %p70
      %p72 = scmp.ne.s32.totalorder %s64, %s66
      %p73 = scmp.eq.s32.totalorder %s21, 1
      %p74 = por %p72, %p73
      %p75 = scmp.ne.s32.totalorder %s66, %s67
      %p76 = scmp.eq.s32.totalorder %s21, 0
      %p77 = por %p75, %p76
      %p78 = scmp.ne.s32.totalorder %s66, %s67
      %p79 = scmp.eq.s32.totalorder %s22, 1
      %p80 = por %p78, %p79
      %p82 = scmp.ne.s32.totalorder %s67, %s81
      %p83 = scmp.eq.s32.totalorder %s22, 0
      %p84 = por %p82, %p83
      %s85 = ssub.s32 %s24, %s31
      %p86 = scmp.eq.s32.totalorder %s85, 0
      %s88 = sadd.s32 %s87, 1
      %s89 = scalar_select %p86, %s87, %s88
      %p92 = pneg %p86
      %p93 = scmp.eq.s32.totalorder %s16, 1
      %p94 = por %p92, %p93
      %p95 = scmp.ne.s32.totalorder %s87, %s90
      %p96 = scmp.eq.s32.totalorder %s16, 0
      %p97 = por %p95, %p96
      %p98 = scmp.ne.s32.totalorder %s87, %s90
      %p99 = scmp.eq.s32.totalorder %s21, 1
      %p100 = por %p98, %p99
      %p101 = scmp.ne.s32.totalorder %s90, %s91
      %p102 = scmp.eq.s32.totalorder %s21, 0
      %p103 = por %p101, %p102
      %p104 = scmp.ne.s32.totalorder %s90, %s91
      %p105 = scmp.eq.s32.totalorder %s22, 1
      %p106 = por %p104, %p105
      %p108 = scmp.ne.s32.totalorder %s91, %s107
      %p109 = scmp.eq.s32.totalorder %s22, 0
      %p110 = por %p108, %p109
      %s111 = ssub.s32 %s23, %s35
      %s112 = ssub.s32 %s24, %s31
      %s113 = sor.u32 %s111, %s112
      %p114 = scmp.eq.s32.totalorder %s113, 0
      %s116 = sadd.s32 %s115, 1
      %s117 = scalar_select %p114, %s115, %s116
      %p120 = pneg %p114
      %p121 = scmp.eq.s32.totalorder %s16, 1
      %p122 = por %p120, %p121
      %p123 = scmp.ne.s32.totalorder %s115, %s118
      %p124 = scmp.eq.s32.totalorder %s16, 0
      %p125 = por %p123, %p124
      %p126 = scmp.ne.s32.totalorder %s115, %s118
      %p127 = scmp.eq.s32.totalorder %s21, 1
      %p128 = por %p126, %p127
      %p129 = scmp.ne.s32.totalorder %s118, %s119
      %p130 = scmp.eq.s32.totalorder %s21, 0
      %p131 = por %p129, %p130
      %p132 = scmp.ne.s32.totalorder %s118, %s119
      %p133 = scmp.eq.s32.totalorder %s22, 1
      %p134 = por %p132, %p133
      %p136 = scmp.ne.s32.totalorder %s119, %s135
      %p137 = scmp.eq.s32.totalorder %s22, 0
      %p138 = por %p136, %p137
      %p139 = scmp.le.s32.totalorder 1, %s16
      %p140 = scmp.lt.s32.totalorder %s16, 3
      %p141 = pnand %p139, %p140
      %p142 = pneg %p141
      // Predicated region
      $region9: #{tpu_custom_call.1} parent=5 // pred_check
        _
      $region10: #{tpu_custom_call.1} parent=5 // pred_check_branch
        %144 = sbr.rel (%p141) target = $region12
      $region11: #{tpu_custom_call.1} parent=5 // pred_region
        %s145 = ssub.s32 %s16, 1
        // Predicated region
        $region13: #{tpu_custom_call.1} parent=11 // pred_check
          %p146 = pneg %p77
        $region14: #{tpu_custom_call.1} parent=11 // pred_check_branch
          %148 = sbr.rel (%p146) target = $region16
        $region15: #{tpu_custom_call.1} parent=11 // pred_region
          %s150 = ssub.s32 128, 128
          %151 = vsyncadd [#allocation6], %s150
          %s153 = sshll.u32 [#allocation5], 4
          %s154 = int_to_ptr.vmem [resolvable:$true] %s153
          %156 = dma.hbm_to_vmem [thread:$0]  %s1, 128, %s154, [#allocation6]
        $region16: #{tpu_custom_call.1} parent=11 // pred_fallthru
          _
        // Predicated region
        $region17: #{tpu_custom_call.1} parent=11 // pred_check
          %p157 = pneg %p103
        $region18: #{tpu_custom_call.1} parent=11 // pred_check_branch
          %159 = sbr.rel (%p157) target = $region20
        $region19: #{tpu_custom_call.1} parent=11 // pred_region
          %s160 = smul.u32 8, %s26
          %s162 = ssub.s32 1024, 1024
          %163 = vsyncadd [#allocation6], %s162
          %s164 = smul.addr %s160, 128
          %s165 = scalar_lea.hbm %s2, %s164
          %s167 = sshll.u32 [#allocation7], 4
          %s168 = int_to_ptr.vmem [resolvable:$true] %s167
          %170 = dma.hbm_to_vmem [thread:$0]  %s165, 1024, %s168, [#allocation6]
        $region20: #{tpu_custom_call.1} parent=11 // pred_fallthru
          _
      $region12: #{tpu_custom_call.1} parent=5 // pred_fallthru
        _
      %p171 = scmp.lt.s32.totalorder %s16, 2
      // Predicated region
      $region21: #{tpu_custom_call.1} parent=5 // pred_check
        %p172 = pneg %p171
      $region22: #{tpu_custom_call.1} parent=5 // pred_check_branch
        %174 = sbr.rel (%p172) target = $region24
      $region23: #{tpu_custom_call.1} parent=5 // pred_region
        // Predicated region
        $region25: #{tpu_custom_call.1} parent=23 // pred_check
          %p175 = pneg %p50
        $region26: #{tpu_custom_call.1} parent=23 // pred_check_branch
          %177 = sbr.rel (%p175) target = $region28
        $region27: #{tpu_custom_call.1} parent=23 // pred_region
          %s178 = sand.u32 %s40, 1
          %s179 = scalar_lea.sflag [#allocation3], %s178
          %s180 = sand.u32 %s40, 1
          %s181 = smul.addr %s180, 320
          %s182 = scalar_lea.vmem [#allocation2], %s181
          %s183 = smul.u32 8, %s24
          %s185 = ssub.s32 5120, 5120
          %186 = vsyncadd %s179, %s185
          %s187 = smul.addr %s23, 40
          %s188 = sadd.s32 %s183, %s187
          %s189 = smul.addr %s188, 128
          %s190 = scalar_lea.hbm %s0, %s189
          %s191 = sshll.u32 %s182, 4
          %s192 = int_to_ptr.vmem [resolvable:$true] %s191
          %197 = dma.hbm_to_vmem [thread:$0]  %s190, 5120, %s192, %s179, 1024, 1024, 64
        $region28: #{tpu_custom_call.1} parent=23 // pred_fallthru
          _
      $region24: #{tpu_custom_call.1} parent=5 // pred_fallthru
        _
      %p198 = scmp.le.s32.totalorder 1, %s16
      %p199 = scmp.lt.s32.totalorder %s16, 3
      %p200 = pnand %p198, %p199
      %p201 = pneg %p200
      // Predicated region
      $region29: #{tpu_custom_call.1} parent=5 // pred_check
        _
      $region30: #{tpu_custom_call.1} parent=5 // pred_check_branch
        %203 = sbr.rel (%p200) target = $region32
      $region31: #{tpu_custom_call.1} parent=5 // pred_region
        %s204 = ssub.s32 %s16, 1
        %s205 = sand.u32 %s43, 1
        %s206 = scalar_lea.sflag [#allocation3], %s205
        %s207 = sand.u32 %s43, 1
        %s208 = smul.addr %s207, 320
        %s209 = scalar_lea.vmem [#allocation2], %s208
        // Predicated region
        $region33: #{tpu_custom_call.1} parent=31 // pred_check
          %p210 = pneg %p56
        $region34: #{tpu_custom_call.1} parent=31 // pred_check_branch
          %212 = sbr.rel (%p210) target = $region36
        $region35: #{tpu_custom_call.1} parent=31 // pred_region
          %213 = dma.done %s206, 5120
        $region36: #{tpu_custom_call.1} parent=31 // pred_fallthru
          _
        // Predicated region
        $region37: #{tpu_custom_call.1} parent=31 // pred_check
          %p214 = pneg %p77
        $region38: #{tpu_custom_call.1} parent=31 // pred_check_branch
          %216 = sbr.rel (%p214) target = $region40
        $region39: #{tpu_custom_call.1} parent=31 // pred_region
          %217 = dma.done [#allocation6], 128
        $region40: #{tpu_custom_call.1} parent=31 // pred_fallthru
          _
        // Predicated region
        $region41: #{tpu_custom_call.1} parent=31 // pred_check
          %p218 = pneg %p103
        $region42: #{tpu_custom_call.1} parent=31 // pred_check_branch
          %220 = sbr.rel (%p218) target = $region44
        $region43: #{tpu_custom_call.1} parent=31 // pred_region
          %221 = dma.done [#allocation6], 1024
        $region44: #{tpu_custom_call.1} parent=31 // pred_fallthru
          _
        %s222 = sand.u32 %s43, 1
        %s223 = scalar_lea.sflag [#allocation3], %s222
        %s224 = sand.u32 %s43, 1
        %s225 = smul.addr %s224, 320
        %s226 = scalar_lea.vmem [#allocation2], %s225
        %p227 = pneg %p56
        %p228 = pneg %p53
        %p229 = pneg %p77
        %p230 = pneg %p74
        %p231 = pneg %p103
        %p232 = pneg %p100
        %p233 = pneg %p131
        %p234 = pneg %p128
        %s235 = sand.u32 %s118, 1
        %s236 = scalar_lea.sflag [#allocation4], %s235
        %s237 = sand.u32 %s118, 1
        %s238 = smul.addr %s237, 64
        %s239 = scalar_lea.vmem [#allocation8], %s238
        %s240 = smul.u32 8, %s26
        %s241 = smul.u32 8, %s26
        %s242 = smul.u32 8, %s26
        %v243 = vld [vmem:[#allocation5] sm:$0xff]
        %v244 = vld [vmem:[%s209] sm:$0xff]
        %v245 = vld [vmem:[%s209 + $0x8] sm:$0xff]
        %v246 = vld [vmem:[%s209 + $0x10] sm:$0xff]
        %v247 = vld [vmem:[%s209 + $0x18] sm:$0xff]
        %v248 = vld [vmem:[%s209 + $0x20] sm:$0xff]
        %v249 = vld [vmem:[%s209 + $0x28] sm:$0xff]
        %v250 = vld [vmem:[%s209 + $0x30] sm:$0xff]
        %v251 = vld [vmem:[%s209 + $0x38] sm:$0xff]
        %v252 = vld [vmem:[%s209 + $0x40] sm:$0xff]
        %v253 = vld [vmem:[%s209 + $0x48] sm:$0xff]
        %v254 = vld [vmem:[%s209 + $0x50] sm:$0xff]
        %v255 = vld [vmem:[%s209 + $0x58] sm:$0xff]
        %v256 = vld [vmem:[%s209 + $0x60] sm:$0xff]
        %v257 = vld [vmem:[%s209 + $0x68] sm:$0xff]
        %v258 = vld [vmem:[%s209 + $0x70] sm:$0xff]
        %v259 = vld [vmem:[%s209 + $0x78] sm:$0xff]
        %v260 = vld [vmem:[%s209 + $0x80] sm:$0xff]
        %v261 = vld [vmem:[%s209 + $0x88] sm:$0xff]
        %v262 = vld [vmem:[%s209 + $0x90] sm:$0xff]
        %v263 = vld [vmem:[%s209 + $0x98] sm:$0xff]
        %v264 = vld [vmem:[%s209 + $0xa0] sm:$0xff]
        %v265 = vld [vmem:[%s209 + $0xa8] sm:$0xff]
        %v266 = vld [vmem:[%s209 + $0xb0] sm:$0xff]
        %v267 = vld [vmem:[%s209 + $0xb8] sm:$0xff]
        %v268 = vld [vmem:[%s209 + $0xc0] sm:$0xff]
        %v269 = vld [vmem:[%s209 + $0xc8] sm:$0xff]
        %v270 = vld [vmem:[%s209 + $0xd0] sm:$0xff]
        %v271 = vld [vmem:[%s209 + $0xd8] sm:$0xff]
        %v272 = vld [vmem:[%s209 + $0xe0] sm:$0xff]
        %v273 = vld [vmem:[%s209 + $0xe8] sm:$0xff]
        %v274 = vld [vmem:[%s209 + $0xf0] sm:$0xff]
        %v275 = vld [vmem:[%s209 + $0xf8] sm:$0xff]
        %v276 = vld [vmem:[%s209 + $0x100] sm:$0xff]
        %v277 = vld [vmem:[%s209 + $0x108] sm:$0xff]
        %v278 = vld [vmem:[%s209 + $0x110] sm:$0xff]
        %v279 = vld [vmem:[%s209 + $0x118] sm:$0xff]
        %v280 = vld [vmem:[%s209 + $0x120] sm:$0xff]
        %v281 = vld [vmem:[%s209 + $0x128] sm:$0xff]
        %v282 = vld [vmem:[%s209 + $0x130] sm:$0xff]
        %v283 = vld [vmem:[%s209 + $0x138] sm:$0xff]
        %v284 = vld [vmem:[#allocation7] sm:$0xff]
        %v285 = vld [vmem:[#allocation7 + $0x8] sm:$0xff]
        %v286 = vld [vmem:[#allocation7 + $0x10] sm:$0xff]
        %v287 = vld [vmem:[#allocation7 + $0x18] sm:$0xff]
        %v288 = vld [vmem:[#allocation7 + $0x20] sm:$0xff]
        %v289 = vld [vmem:[#allocation7 + $0x28] sm:$0xff]
        %v290 = vld [vmem:[#allocation7 + $0x30] sm:$0xff]
        %v291 = vld [vmem:[#allocation7 + $0x38] sm:$0xff]
        %vm292 = vcmask 326656
        %v294 = vsel %vm292, %v243, 0
        %296 = vmatprep.subr.mxu0 %v245
        %297 = vmatpush1.msra.mxu0 %v244
        %298 = vmatprep.subr.mxu0 %v253
        %299 = vmatpush1.msra.mxu0 %v252
        %300 = vmatprep.subr.mxu0 %v261
        %301 = vmatpush1.msra.mxu0 %v260
        %302 = vmatprep.subr.mxu0 %v269
        %303 = vmatpush1.msra.mxu0 %v268
        %304 = vmatprep.subr.mxu0 %v277
        %305 = vmatpush1.msra.mxu0 %v276
        %306 = vmatprep.subr.mxu0 0.0
        %307 = vmatpush1.msra.mxu0 0.0
        %308 = vmatprep.subr.mxu0 0.0
        %309 = vmatpush1.msra.mxu0 0.0
        %310 = vmatprep.subr.mxu0 0.0
        %311 = vmatpush1.msra.mxu0 0.0
        %312 = vmatprep.subr.mxu0 0.0
        %313 = vmatpush1.msra.mxu0 0.0
        %314 = vmatprep.subr.mxu0 0.0
        %315 = vmatpush1.msra.mxu0 0.0
        %316 = vmatprep.subr.mxu0 0.0
        %317 = vmatpush1.msra.mxu0 0.0
        %318 = vmatprep.subr.mxu0 0.0
        %319 = vmatpush1.msra.mxu0 0.0
        %320 = vmatprep.subr.mxu0 0.0
        %321 = vmatpush1.msra.mxu0 0.0
        %322 = vmatprep.subr.mxu0 0.0
        %323 = vmatpush1.msra.mxu0 0.0
        %324 = vmatprep.subr.mxu0 0.0
        %325 = vmatpush1.msra.mxu0 0.0
        %326 = vmatprep.subr.mxu0 0.0
        %327 = vmatpush1.msra.mxu0 0.0
        %328 = vmatprep.subr.mxu0 0.0
        %329 = vmatpush1.msra.mxu0 0.0
        %330 = vmatprep.subr.mxu0 0.0
        %331 = vmatpush1.msra.mxu0 0.0
        %332 = vmatprep.subr.mxu0 0.0
        %333 = vmatpush1.msra.mxu0 0.0
        %334 = vmatprep.subr.mxu0 0.0
        %335 = vmatpush1.msra.mxu0 0.0
        %336 = vmatprep.subr.mxu0 0.0
        %337 = vmatpush1.msra.mxu0 0.0
        %338 = vmatprep.subr.mxu0 0.0
        %339 = vmatpush1.msra.mxu0 0.0
        %340 = vmatprep.subr.mxu0 0.0
        %341 = vmatpush1.msra.mxu0 0.0
        %342 = vmatprep.subr.mxu0 0.0
        %343 = vmatpush1.msra.mxu0 0.0
        %344 = vmatprep.subr.mxu0 0.0
        %345 = vmatpush1.msra.mxu0 0.0
        %346 = vmatprep.subr.mxu0 0.0
        %347 = vmatpush1.msra.mxu0 0.0
        %348 = vmatprep.subr.mxu0 0.0
        %349 = vmatpush1.msra.mxu0 0.0
        %350 = vmatprep.subr.mxu0 0.0
        %351 = vmatpush1.msra.mxu0 0.0
        %352 = vmatprep.subr.mxu0 0.0
        %353 = vmatpush1.msra.mxu0 0.0
        %354 = vmatprep.subr.mxu0 0.0
        %355 = vmatpush1.msra.mxu0 0.0
        %356 = vmatprep.subr.mxu0 0.0
        %357 = vmatpush1.msra.mxu0 0.0
        %358 = vmatprep.subr.mxu0 0.0
        %359 = vmatpush1.msra.mxu0 0.0
        %360 = vmatprep.mubr.f32.mxu0 0.0
        %361 = vmatmul.mubr.f32.gmra.mrb[0].mxu0 %v294
        %v362 = vpop.f32.mrb[0].mxu0
        %v363 = vadd.f32 %v284, %v362
        %v364 = vpop.f32.mrb[0].mxu0
        %v365 = vadd.f32 %v285, %v364
        %366 = vdwg.mxu0
        %367 = vmatprep.subr.mxu0 %v247
        %368 = vmatpush1.msra.mxu0 %v246
        %369 = vmatprep.subr.mxu0 %v255
        %370 = vmatpush1.msra.mxu0 %v254
        %371 = vmatprep.subr.mxu0 %v263
        %372 = vmatpush1.msra.mxu0 %v262
        %373 = vmatprep.subr.mxu0 %v271
        %374 = vmatpush1.msra.mxu0 %v270
        %375 = vmatprep.subr.mxu0 %v279
        %376 = vmatpush1.msra.mxu0 %v278
        %377 = vmatprep.subr.mxu0 0.0
        %378 = vmatpush1.msra.mxu0 0.0
        %379 = vmatprep.subr.mxu0 0.0
        %380 = vmatpush1.msra.mxu0 0.0
        %381 = vmatprep.subr.mxu0 0.0
        %382 = vmatpush1.msra.mxu0 0.0
        %383 = vmatprep.subr.mxu0 0.0
        %384 = vmatpush1.msra.mxu0 0.0
        %385 = vmatprep.subr.mxu0 0.0
        %386 = vmatpush1.msra.mxu0 0.0
        %387 = vmatprep.subr.mxu0 0.0
        %388 = vmatpush1.msra.mxu0 0.0
        %389 = vmatprep.subr.mxu0 0.0
        %390 = vmatpush1.msra.mxu0 0.0
        %391 = vmatprep.subr.mxu0 0.0
        %392 = vmatpush1.msra.mxu0 0.0
        %393 = vmatprep.subr.mxu0 0.0
        %394 = vmatpush1.msra.mxu0 0.0
        %395 = vmatprep.subr.mxu0 0.0
        %396 = vmatpush1.msra.mxu0 0.0
        %397 = vmatprep.subr.mxu0 0.0
        %398 = vmatpush1.msra.mxu0 0.0
        %399 = vmatprep.subr.mxu0 0.0
        %400 = vmatpush1.msra.mxu0 0.0
        %401 = vmatprep.subr.mxu0 0.0
        %402 = vmatpush1.msra.mxu0 0.0
        %403 = vmatprep.subr.mxu0 0.0
        %404 = vmatpush1.msra.mxu0 0.0
        %405 = vmatprep.subr.mxu0 0.0
        %406 = vmatpush1.msra.mxu0 0.0
        %407 = vmatprep.subr.mxu0 0.0
        %408 = vmatpush1.msra.mxu0 0.0
        %409 = vmatprep.subr.mxu0 0.0
        %410 = vmatpush1.msra.mxu0 0.0
        %411 = vmatprep.subr.mxu0 0.0
        %412 = vmatpush1.msra.mxu0 0.0
        %413 = vmatprep.subr.mxu0 0.0
        %414 = vmatpush1.msra.mxu0 0.0
        %415 = vmatprep.subr.mxu0 0.0
        %416 = vmatpush1.msra.mxu0 0.0
        %417 = vmatprep.subr.mxu0 0.0
        %418 = vmatpush1.msra.mxu0 0.0
        %419 = vmatprep.subr.mxu0 0.0
        %420 = vmatpush1.msra.mxu0 0.0
        %421 = vmatprep.subr.mxu0 0.0
        %422 = vmatpush1.msra.mxu0 0.0
        %423 = vmatprep.subr.mxu0 0.0
        %424 = vmatpush1.msra.mxu0 0.0
        %425 = vmatprep.subr.mxu0 0.0
        %426 = vmatpush1.msra.mxu0 0.0
        %427 = vmatprep.subr.mxu0 0.0
        %428 = vmatpush1.msra.mxu0 0.0
        %429 = vmatprep.subr.mxu0 0.0
        %430 = vmatpush1.msra.mxu0 0.0
        %431 = vmatprep.mubr.f32.mxu0 0.0
        %432 = vmatmul.mubr.f32.gmra.mrb[0].mxu0 %v294
        %v433 = vpop.f32.mrb[0].mxu0
        %v434 = vadd.f32 %v286, %v433
        %v435 = vpop.f32.mrb[0].mxu0
        %v436 = vadd.f32 %v287, %v435
        %437 = vdwg.mxu0
        %438 = vmatprep.subr.mxu0 %v249
        %439 = vmatpush1.msra.mxu0 %v248
        %440 = vmatprep.subr.mxu0 %v257
        %441 = vmatpush1.msra.mxu0 %v256
        %442 = vmatprep.subr.mxu0 %v265
        %443 = vmatpush1.msra.mxu0 %v264
        %444 = vmatprep.subr.mxu0 %v273
        %445 = vmatpush1.msra.mxu0 %v272
        %446 = vmatprep.subr.mxu0 %v281
        %447 = vmatpush1.msra.mxu0 %v280
        %448 = vmatprep.subr.mxu0 0.0
        %449 = vmatpush1.msra.mxu0 0.0
        %450 = vmatprep.subr.mxu0 0.0
        %451 = vmatpush1.msra.mxu0 0.0
        %452 = vmatprep.subr.mxu0 0.0
        %453 = vmatpush1.msra.mxu0 0.0
        %454 = vmatprep.subr.mxu0 0.0
        %455 = vmatpush1.msra.mxu0 0.0
        %456 = vmatprep.subr.mxu0 0.0
        %457 = vmatpush1.msra.mxu0 0.0
        %458 = vmatprep.subr.mxu0 0.0
        %459 = vmatpush1.msra.mxu0 0.0
        %460 = vmatprep.subr.mxu0 0.0
        %461 = vmatpush1.msra.mxu0 0.0
        %462 = vmatprep.subr.mxu0 0.0
        %463 = vmatpush1.msra.mxu0 0.0
        %464 = vmatprep.subr.mxu0 0.0
        %465 = vmatpush1.msra.mxu0 0.0
        %466 = vmatprep.subr.mxu0 0.0
        %467 = vmatpush1.msra.mxu0 0.0
        %468 = vmatprep.subr.mxu0 0.0
        %469 = vmatpush1.msra.mxu0 0.0
        %470 = vmatprep.subr.mxu0 0.0
        %471 = vmatpush1.msra.mxu0 0.0
        %472 = vmatprep.subr.mxu0 0.0
        %473 = vmatpush1.msra.mxu0 0.0
        %474 = vmatprep.subr.mxu0 0.0
        %475 = vmatpush1.msra.mxu0 0.0
        %476 = vmatprep.subr.mxu0 0.0
        %477 = vmatpush1.msra.mxu0 0.0
        %478 = vmatprep.subr.mxu0 0.0
        %479 = vmatpush1.msra.mxu0 0.0
        %480 = vmatprep.subr.mxu0 0.0
        %481 = vmatpush1.msra.mxu0 0.0
        %482 = vmatprep.subr.mxu0 0.0
        %483 = vmatpush1.msra.mxu0 0.0
        %484 = vmatprep.subr.mxu0 0.0
        %485 = vmatpush1.msra.mxu0 0.0
        %486 = vmatprep.subr.mxu0 0.0
        %487 = vmatpush1.msra.mxu0 0.0
        %488 = vmatprep.subr.mxu0 0.0
        %489 = vmatpush1.msra.mxu0 0.0
        %490 = vmatprep.subr.mxu0 0.0
        %491 = vmatpush1.msra.mxu0 0.0
        %492 = vmatprep.subr.mxu0 0.0
        %493 = vmatpush1.msra.mxu0 0.0
        %494 = vmatprep.subr.mxu0 0.0
        %495 = vmatpush1.msra.mxu0 0.0
        %496 = vmatprep.subr.mxu0 0.0
        %497 = vmatpush1.msra.mxu0 0.0
        %498 = vmatprep.subr.mxu0 0.0
        %499 = vmatpush1.msra.mxu0 0.0
        %500 = vmatprep.subr.mxu0 0.0
        %501 = vmatpush1.msra.mxu0 0.0
        %502 = vmatprep.mubr.f32.mxu0 0.0
        %503 = vmatmul.mubr.f32.gmra.mrb[0].mxu0 %v294
        %v504 = vpop.f32.mrb[0].mxu0
        %v505 = vadd.f32 %v288, %v504
        %v506 = vpop.f32.mrb[0].mxu0
        %v507 = vadd.f32 %v289, %v506
        %508 = vdwg.mxu0
        %509 = vmatprep.subr.mxu0 %v251
        %510 = vmatpush1.msra.mxu0 %v250
        %511 = vmatprep.subr.mxu0 %v259
        %512 = vmatpush1.msra.mxu0 %v258
        %513 = vmatprep.subr.mxu0 %v267
        %514 = vmatpush1.msra.mxu0 %v266
        %515 = vmatprep.subr.mxu0 %v275
        %516 = vmatpush1.msra.mxu0 %v274
        %517 = vmatprep.subr.mxu0 %v283
        %518 = vmatpush1.msra.mxu0 %v282
        %519 = vmatprep.subr.mxu0 0.0
        %520 = vmatpush1.msra.mxu0 0.0
        %521 = vmatprep.subr.mxu0 0.0
        %522 = vmatpush1.msra.mxu0 0.0
        %523 = vmatprep.subr.mxu0 0.0
        %524 = vmatpush1.msra.mxu0 0.0
        %525 = vmatprep.subr.mxu0 0.0
        %526 = vmatpush1.msra.mxu0 0.0
        %527 = vmatprep.subr.mxu0 0.0
        %528 = vmatpush1.msra.mxu0 0.0
        %529 = vmatprep.subr.mxu0 0.0
        %530 = vmatpush1.msra.mxu0 0.0
        %531 = vmatprep.subr.mxu0 0.0
        %532 = vmatpush1.msra.mxu0 0.0
        %533 = vmatprep.subr.mxu0 0.0
        %534 = vmatpush1.msra.mxu0 0.0
        %535 = vmatprep.subr.mxu0 0.0
        %536 = vmatpush1.msra.mxu0 0.0
        %537 = vmatprep.subr.mxu0 0.0
        %538 = vmatpush1.msra.mxu0 0.0
        %539 = vmatprep.subr.mxu0 0.0
        %540 = vmatpush1.msra.mxu0 0.0
        %541 = vmatprep.subr.mxu0 0.0
        %542 = vmatpush1.msra.mxu0 0.0
        %543 = vmatprep.subr.mxu0 0.0
        %544 = vmatpush1.msra.mxu0 0.0
        %545 = vmatprep.subr.mxu0 0.0
        %546 = vmatpush1.msra.mxu0 0.0
        %547 = vmatprep.subr.mxu0 0.0
        %548 = vmatpush1.msra.mxu0 0.0
        %549 = vmatprep.subr.mxu0 0.0
        %550 = vmatpush1.msra.mxu0 0.0
        %551 = vmatprep.subr.mxu0 0.0
        %552 = vmatpush1.msra.mxu0 0.0
        %553 = vmatprep.subr.mxu0 0.0
        %554 = vmatpush1.msra.mxu0 0.0
        %555 = vmatprep.subr.mxu0 0.0
        %556 = vmatpush1.msra.mxu0 0.0
        %557 = vmatprep.subr.mxu0 0.0
        %558 = vmatpush1.msra.mxu0 0.0
        %559 = vmatprep.subr.mxu0 0.0
        %560 = vmatpush1.msra.mxu0 0.0
        %561 = vmatprep.subr.mxu0 0.0
        %562 = vmatpush1.msra.mxu0 0.0
        %563 = vmatprep.subr.mxu0 0.0
        %564 = vmatpush1.msra.mxu0 0.0
        %565 = vmatprep.subr.mxu0 0.0
        %566 = vmatpush1.msra.mxu0 0.0
        %567 = vmatprep.subr.mxu0 0.0
        %568 = vmatpush1.msra.mxu0 0.0
        %569 = vmatprep.subr.mxu0 0.0
        %570 = vmatpush1.msra.mxu0 0.0
        %571 = vmatprep.subr.mxu0 0.0
        %572 = vmatpush1.msra.mxu0 0.0
        %573 = vmatprep.mubr.f32.mxu0 0.0
        %574 = vmatmul.mubr.f32.gmra.mrb[0].mxu0 %v294
        %v575 = vpop.f32.mrb[0].mxu0
        %v576 = vadd.f32 %v290, %v575
        %v577 = vpop.f32.mrb[0].mxu0
        %v578 = vadd.f32 %v291, %v577
        %579 = vdwg.mxu0
        %580 = vst [vmem:[%s239] sm:$0xff] %v363
        %581 = vst [vmem:[%s239 + $0x8] sm:$0xff] %v365
        %582 = vst [vmem:[%s239 + $0x10] sm:$0xff] %v434
        %583 = vst [vmem:[%s239 + $0x18] sm:$0xff] %v436
        %584 = vst [vmem:[%s239 + $0x20] sm:$0xff] %v505
        %585 = vst [vmem:[%s239 + $0x28] sm:$0xff] %v507
        %586 = vst [vmem:[%s239 + $0x30] sm:$0xff] %v576
        %587 = vst [vmem:[%s239 + $0x38] sm:$0xff] %v578
        %s588 = sand.u32 %s118, 1
        %s589 = scalar_lea.sflag [#allocation4], %s588
        %s590 = sand.u32 %s118, 1
        %s591 = smul.addr %s590, 64
        %s592 = scalar_lea.vmem [#allocation8], %s591
        // Predicated region
        $region45: #{tpu_custom_call.1} parent=31 // pred_check
          %p593 = pneg %p128
        $region46: #{tpu_custom_call.1} parent=31 // pred_check_branch
          %595 = sbr.rel (%p593) target = $region48
        $region47: #{tpu_custom_call.1} parent=31 // pred_region
          %s596 = smul.u32 8, %s26
          %s598 = ssub.s32 1024, 1024
          %599 = vsyncadd %s589, %s598
          %s600 = smul.addr %s25, 8
          %s601 = sadd.s32 %s596, %s600
          %s602 = smul.addr %s601, 128
          %s603 = scalar_lea.hbm %s3, %s602
          %s605 = sshll.u32 %s592, 4
          %s606 = int_to_ptr.vmem [resolvable:$true] %s605
          %608 = dma.vmem_to_hbm [thread:$0]  %s606, 1024, %s603, %s589
        $region48: #{tpu_custom_call.1} parent=31 // pred_fallthru
          _
      $region32: #{tpu_custom_call.1} parent=5 // pred_fallthru
        _
      %p609 = scmp.le.s32.totalorder 2, %s16
      // Predicated region
      $region49: #{tpu_custom_call.1} parent=5 // pred_check
        %p610 = pneg %p609
      $region50: #{tpu_custom_call.1} parent=5 // pred_check_branch
        %612 = sbr.rel (%p610) target = $region52
      $region51: #{tpu_custom_call.1} parent=5 // pred_region
        %s613 = ssub.s32 %s16, 2
        // Predicated region
        $region53: #{tpu_custom_call.1} parent=51 // pred_check
          %p614 = pneg %p134
        $region54: #{tpu_custom_call.1} parent=51 // pred_check_branch
          %616 = sbr.rel (%p614) target = $region56
        $region55: #{tpu_custom_call.1} parent=51 // pred_region
          %s617 = sand.u32 %s119, 1
          %s618 = scalar_lea.sflag [#allocation4], %s617
          %s619 = sand.u32 %s119, 1
          %s620 = smul.addr %s619, 64
          %s621 = scalar_lea.vmem [#allocation8], %s620
          %622 = dma.done %s618, 1024
        $region56: #{tpu_custom_call.1} parent=51 // pred_fallthru
          _
      $region52: #{tpu_custom_call.1} parent=5 // pred_fallthru
        _
    $region6: #{tpu_custom_call.1} parent=1 // loop_footer
      %s20 = sadd.s32 1, %s16
    $region7: #{tpu_custom_call.1} parent=1 // loop_footer_branch
      %15 = sbr.rel target = $region3
    $region8: #{tpu_custom_call.1} parent=1 // loop_exit
      _
    %623 = vsyncpa [#allocation3], 1
    %s624 = scalar_lea.sflag [#allocation3], 1
    %625 = vsyncpa %s624, 1
    %626 = vsyncpa [#allocation6], 1
    %627 = vsyncpa [#allocation4], 1
    %s628 = scalar_lea.sflag [#allocation4], 1
    %629 = vsyncpa %s628, 1

</llo_original>
